<compile_context>
chip_gen: v6e
topology: v6e:2x2x1
jax: 0.10.0
libtpu: 0.0.40
codegen_flags: <defaults>
</compile_context>

<pallas_src>
import math

import numpy as np

import jax
import jax.numpy as jnp
from jax import lax
from jax.experimental import pallas as pl
from jax.experimental.pallas import tpu as pltpu

# ---- model config (consistent with the module's __init__) -------------------
EMBED_DIM = 32
NUM_HEADS = 4
FFN_DIM = 64
HEAD_DIM = EMBED_DIM // NUM_HEADS
LN_EPS = 1e-5

BATCH = 2
SEQ = 8

PACK_W = 3 * EMBED_DIM      # lane width (96) of the packed weight / bias slabs


def _mm_dtype():
    """bf16 MXU operands on v6e / v7x (per perf review); f32 on v5e / others."""
    try:
        kind = jax.devices()[0].device_kind.lower()
    except Exception:
        return jnp.float32
    if any(tag in kind for tag in ("v6", "v7", "tpu7")):
        return jnp.bfloat16
    return jnp.float32


# ------------------------------ kernel ----------------------------------------
def _encoder_layer_kernel(x_ref, w_ref, blt_ref, mask_ref, out_ref):
    """Whole (folded) batch in a single grid step. Activations stay fp32."""
    BS, E = x_ref.shape                 # (B*S, E) = (16, 32)
    F = FFN_DIM
    H = NUM_HEADS
    HBS = H * BS                        # 64

    x = x_ref[...]                      # (BS, E) f32

    def mm(a, w):                       # MXU matmul, f32 accumulation
        return jnp.dot(a.astype(w.dtype), w, preferred_element_type=jnp.float32)

    # ---- packed weights: static, 8/16-row-aligned ref slices ----------------
    wqkv = w_ref[0:E, :]                        # (E, 3E)   rows   0: 32
    wo   = w_ref[E:2 * E, 0:E]                  # (E, E)    rows  32: 64
    w1   = w_ref[2 * E:3 * E, 0:F]              # (E, F)    rows  64: 96
    w2   = w_ref[3 * E:3 * E + F, 0:E]          # (F, E)    rows  96:160

    # ---- packed biases / LayerNorm params (f32) ------------------------------
    b_qkv = blt_ref[0:1, :]
    b_o   = blt_ref[1:2, 0:E]
    b_1   = blt_ref[2:3, 0:F]
    b_2   = blt_ref[3:4, 0:E]
    ln1w  = blt_ref[4:5, 0:E]
    ln1b  = blt_ref[5:6, 0:E]
    ln2w  = blt_ref[6:7, 0:E]
    ln2b  = blt_ref[7:8, 0:E]

    # ---- constant block masks (host-built, no in-kernel iota/compare) --------
    col_head  = mask_ref[0:E, :]                               # (E, HBS) 0/1
    head_sum  = mask_ref[E:E + HBS, :]                         # (HBS, HBS) 0/1
    batch_add = mask_ref[E + HBS:E + HBS + BS, :]              # (BS, HBS) 0/-1e30
    row_head  = mask_ref[E + HBS + BS:E + 2 * HBS + BS, 0:E]   # (HBS, E) 0/1

    # ---- fused QKV projection (weights pre-transposed, q pre-scaled) ---------
    qkv = mm(x, wqkv) + b_qkv            # (BS, 3E)
    q = qkv[:, 0:E]                      # already scaled by 1/sqrt(dh)
    k = qkv[:, E:2 * E]
    v = qkv[:, 2 * E:3 * E]

    # ---- block-masked multi-head attention over the whole folded batch -------
    # scores[r, h*BS + r2] = q_h[r] . k_h[r2]; cross-batch pairs masked by -1e30
    k_bd = jnp.concatenate([k.T] * H, axis=1) * col_head               # (E, HBS)
    scores = jnp.dot(q, k_bd, preferred_element_type=jnp.float32) + batch_add
    m = jnp.max(scores, axis=-1, keepdims=True)                        # (BS, 1)
    p = jnp.exp(scores - m)              # masked entries -> exactly 0
    denom = jnp.dot(p, head_sum, preferred_element_type=jnp.float32)   # per-head sums
    p = p * pl.reciprocal(jnp.maximum(denom, 1e-30), approx=True)

    v_bd = jnp.concatenate([v] * H, axis=0) * row_head                 # (HBS, E)
    attn = jnp.dot(p, v_bd, preferred_element_type=jnp.float32)        # (BS, E)

    # output projection
    attn = mm(attn, wo) + b_o

    # ---- residual + LayerNorm1 (rsqrt -> EUP slot) ----------------------------
    h1 = x + attn
    mu1 = jnp.mean(h1, axis=-1, keepdims=True)
    var1 = jnp.mean((h1 - mu1) * (h1 - mu1), axis=-1, keepdims=True)
    h1 = (h1 - mu1) * lax.rsqrt(var1 + LN_EPS) * ln1w + ln1b

    # ---- feed-forward (ReLU) ---------------------------------------------------
    f = jnp.maximum(mm(h1, w1) + b_1, 0.0)
    f = mm(f, w2) + b_2

    # ---- residual + LayerNorm2; store (BS, E) directly (reshape on host) ------
    h2 = h1 + f
    mu2 = jnp.mean(h2, axis=-1, keepdims=True)
    var2 = jnp.mean((h2 - mu2) * (h2 - mu2), axis=-1, keepdims=True)
    out_ref[...] = (h2 - mu2) * lax.rsqrt(var2 + LN_EPS) * ln2w + ln2b


# ------------------------------ parameters ------------------------------------
def init_params(key):
    """Deterministic synthetic parameters with PyTorch-like shapes."""
    ks = jax.random.split(key, 8)
    E, F = EMBED_DIM, FFN_DIM

    def uni(k, shape, fan_in):
        bound = 1.0 / math.sqrt(fan_in)
        return jax.random.uniform(k, shape, jnp.float32, -bound, bound)

    return dict(
        wqkv=uni(ks[0], (3 * E, E), E), bqkv=uni(ks[1], (3 * E,), E),
        wo=uni(ks[2], (E, E), E), bo=uni(ks[3], (E,), E),
        ln1w=jnp.ones((E,), jnp.float32), ln1b=jnp.zeros((E,), jnp.float32),
        w1=uni(ks[4], (F, E), E), b1=uni(ks[5], (F,), E),
        w2=uni(ks[6], (E, F), F), b2=uni(ks[7], (E,), F),
        ln2w=jnp.ones((E,), jnp.float32), ln2b=jnp.zeros((E,), jnp.float32),
    )


def _build_mask_pack(batch, seq):
    """All four attention block masks as one (E + 2*HBS + BS, HBS) f32 slab."""
    E, H, dh = EMBED_DIM, NUM_HEADS, HEAD_DIM
    BS = batch * seq
    HBS = H * BS
    col = np.arange(HBS)
    col_head = (np.arange(E)[:, None] // dh == col[None, :] // BS)
    head_sum = (col[:, None] // BS == col[None, :] // BS)
    same_batch = (np.arange(BS)[:, None] // seq == (col[None, :] % BS) // seq)
    batch_add = np.where(same_batch, 0.0, -1e30)
    row_head = (col[:, None] // BS == np.arange(E)[None, :] // dh)

    pack = np.zeros((E + 2 * HBS + BS, HBS), np.float32)
    pack[0:E, :] = col_head
    pack[E:E + HBS, :] = head_sum
    pack[E + HBS:E + HBS + BS, :] = batch_add
    pack[E + HBS + BS:, 0:E] = row_head            # 8-row-aligned offsets
    return jnp.asarray(pack)


def prepare_params(p, batch=BATCH, seq=SEQ, mm_dtype=None):
    """One-time host-side prep: transpose weights, fold the attention scale into
    Wq/bq, pack weights into one slab and biases/LN into another, build masks."""
    if mm_dtype is None:
        mm_dtype = _mm_dtype()
    E = EMBED_DIM
    scale = 1.0 / math.sqrt(HEAD_DIM)
    q_scale = jnp.concatenate([jnp.full((E,), scale, jnp.float32),
                               jnp.ones((2 * E,), jnp.float32)])
    wqkv_t = (p["wqkv"] * q_scale[:, None]).T                  # (E, 3E)
    bqkv = p["bqkv"] * q_scale

    def padw(m):
        return jnp.pad(m, ((0, 0), (0, PACK_W - m.shape[1])))

    w_pack = jnp.concatenate(
        [padw(wqkv_t), padw(p["wo"].T), padw(p["w1"].T), padw(p["w2"].T)],
        axis=0).astype(mm_dtype)                               # (160, 96)

    def padv(v):
        return jnp.pad(v, (0, PACK_W - v.shape[0]))

    bias_ln = jnp.stack([bqkv, padv(p["bo"]), padv(p["b1"]), padv(p["b2"]),
                         padv(p["ln1w"]), padv(p["ln1b"]),
                         padv(p["ln2w"]), padv(p["ln2b"])])    # (8, 96) f32

    return dict(w_pack=w_pack, bias_ln=bias_ln,
                mask_pack=_build_mask_pack(batch, seq))


# ------------------------------ wrapper ----------------------------------------
def self_attention_forward(x, kp):
    B, S, E = x.shape
    assert E == EMBED_DIM
    BS = B * S
    x_flat = x.reshape(BS, E)                    # contiguous, free

    args = (x_flat, kp["w_pack"], kp["bias_ln"], kp["mask_pack"])

    # TODO(synk): if this layer is called repeatedly (layer stack / many
    # microbatches), fold the repeat dimension into a grid axis whose weight /
    # mask BlockSpecs return a constant block index so they stay VMEM-resident
    # while only x / out blocks stream; per-call launch + DMA dominate here.
    out = pl.pallas_call(
        _encoder_layer_kernel,
        out_shape=jax.ShapeDtypeStruct((BS, E), jnp.float32),
        grid=(1,),
        in_specs=[pl.BlockSpec(a.shape, lambda i: (0, 0)) for a in args],
        out_specs=pl.BlockSpec((BS, E), lambda i: (0, 0)),
        compiler_params=pltpu.CompilerParams(
            dimension_semantics=("arbitrary",)),   # tiny problem: single core
    )(*args)
    # (BS, E) and (B, S*E) are bit-identical row-major layouts: free reshape,
    # and it reproduces torch.cat([y[:, i, :] for i in range(S)], dim=-1).
    return out.reshape(B, S * E)


# ------------------------------ reference --------------------------------------
def _reference_forward(x, params):
    """Pure-JAX f32 reference of the TransformerEncoderLayer + cat (eval mode)."""
    B, S, E = x.shape
    H, dh = NUM_HEADS, HEAD_DIM
    qkv = jnp.einsum("bse,fe->bsf", x, params["wqkv"]) + params["bqkv"]
    q, k, v = qkv[..., :E], qkv[..., E:2 * E], qkv[..., 2 * E:]
    q = q.reshape(B, S, H, dh).transpose(0, 2, 1, 3)
    k = k.reshape(B, S, H, dh).transpose(0, 2, 1, 3)
    v = v.reshape(B, S, H, dh).transpose(0, 2, 1, 3)
    s = jnp.einsum("bhqd,bhkd->bhqk", q, k) / math.sqrt(dh)
    a = jax.nn.softmax(s, axis=-1)
    o = jnp.einsum("bhqk,bhkd->bhqd", a, v).transpose(0, 2, 1, 3).reshape(B, S, E)
    o = jnp.einsum("bse,fe->bsf", o, params["wo"]) + params["bo"]

    def ln(t, w, b):
        mu = t.mean(-1, keepdims=True)
        var = ((t - mu) ** 2).mean(-1, keepdims=True)
        return (t - mu) / jnp.sqrt(var + LN_EPS) * w + b

    h1 = ln(x + o, params["ln1w"], params["ln1b"])
    f = jax.nn.relu(jnp.einsum("bse,fe->bsf", h1, params["w1"]) + params["b1"])
    f = jnp.einsum("bsf,ef->bse", f, params["w2"]) + params["b2"]
    h2 = ln(h1 + f, params["ln2w"], params["ln2b"])
    return h2.reshape(B, S * E)


if __name__ == "__main__":
    key = jax.random.PRNGKey(0)
    kx, kp_ = jax.random.split(key)
    x = jax.random.normal(kx, (BATCH, SEQ, EMBED_DIM), jnp.float32)

    torch_like_params = init_params(kp_)
    kernel_params = prepare_params(torch_like_params)

    y = self_attention_forward(x, kernel_params)
    jax.block_until_ready(y)
    assert y.shape == (BATCH, SEQ * EMBED_DIM)

    y_ref = _reference_forward(x, torch_like_params)
    err = float(jnp.max(jnp.abs(y - y_ref)))
    # f32-vs-f32 gets a tight bound; bf16 MXU operands (v6e/v7x) a looser one.
    tol = 2e-2 if kernel_params["w_pack"].dtype == jnp.float32 else 1e-1
    assert err < tol, f"kernel/reference mismatch: {err} (tol {tol})"

    print("KERNEL_OK")
</pallas_src>

<mosaic_0001>
module attributes {stable_mosaic.version = 11 : i64} {
  func.func @_encoder_layer_kernel(%arg0: i32, %arg1: memref<16x32xf32, #tpu.memory_space<vmem>>, %arg2: memref<160x96xf32, #tpu.memory_space<vmem>>, %arg3: memref<8x96xf32, #tpu.memory_space<vmem>>, %arg4: memref<176x64xf32, #tpu.memory_space<vmem>>, %arg5: memref<16x32xf32, #tpu.memory_space<vmem>>) attributes {dimension_semantics = [#tpu.dimension_semantics<arbitrary>], iteration_bounds = array<i64: 1>, scalar_prefetch = 0 : i64, scratch_operands = 0 : i64, tpu.core_type = #tpu.core_type<tc>, window_params = [{pipeline_mode = #tpu.pipeline_mode<synchronous>, transform_indices = @transform_0, window_bounds = array<i64: 16, 32>}, {pipeline_mode = #tpu.pipeline_mode<synchronous>, transform_indices = @transform_1, window_bounds = array<i64: 160, 96>}, {pipeline_mode = #tpu.pipeline_mode<synchronous>, transform_indices = @transform_2, window_bounds = array<i64: 8, 96>}, {pipeline_mode = #tpu.pipeline_mode<synchronous>, transform_indices = @transform_3, window_bounds = array<i64: 176, 64>}, {pipeline_mode = #tpu.pipeline_mode<synchronous>, transform_indices = @transform_4, window_bounds = array<i64: 16, 32>}]} {
    %c0 = arith.constant 0 : index
    %c0_0 = arith.constant 0 : index
    %0 = vector.load %arg1[%c0, %c0_0] : memref<16x32xf32, #tpu.memory_space<vmem>>, vector<16x32xf32>
    %c0_1 = arith.constant 0 : index
    %c0_2 = arith.constant 0 : index
    %1 = vector.load %arg2[%c0_1, %c0_2] : memref<160x96xf32, #tpu.memory_space<vmem>>, vector<32x96xf32>
    %c32 = arith.constant 32 : index
    %c0_3 = arith.constant 0 : index
    %2 = vector.load %arg2[%c32, %c0_3] : memref<160x96xf32, #tpu.memory_space<vmem>>, vector<32x32xf32>
    %c64 = arith.constant 64 : index
    %c0_4 = arith.constant 0 : index
    %3 = vector.load %arg2[%c64, %c0_4] : memref<160x96xf32, #tpu.memory_space<vmem>>, vector<32x64xf32>
    %c96 = arith.constant 96 : index
    %c0_5 = arith.constant 0 : index
    %4 = vector.load %arg2[%c96, %c0_5] : memref<160x96xf32, #tpu.memory_space<vmem>>, vector<64x32xf32>
    %c0_6 = arith.constant 0 : index
    %c0_7 = arith.constant 0 : index
    %5 = vector.load %arg3[%c0_6, %c0_7] : memref<8x96xf32, #tpu.memory_space<vmem>>, vector<1x96xf32>
    %c1 = arith.constant 1 : index
    %c0_8 = arith.constant 0 : index
    %6 = vector.load %arg3[%c1, %c0_8] : memref<8x96xf32, #tpu.memory_space<vmem>>, vector<1x32xf32>
    %c2 = arith.constant 2 : index
    %c0_9 = arith.constant 0 : index
    %7 = vector.load %arg3[%c2, %c0_9] : memref<8x96xf32, #tpu.memory_space<vmem>>, vector<1x64xf32>
    %c3 = arith.constant 3 : index
    %c0_10 = arith.constant 0 : index
    %8 = vector.load %arg3[%c3, %c0_10] : memref<8x96xf32, #tpu.memory_space<vmem>>, vector<1x32xf32>
    %c4 = arith.constant 4 : index
    %c0_11 = arith.constant 0 : index
    %9 = vector.load %arg3[%c4, %c0_11] : memref<8x96xf32, #tpu.memory_space<vmem>>, vector<1x32xf32>
    %c5 = arith.constant 5 : index
    %c0_12 = arith.constant 0 : index
    %10 = vector.load %arg3[%c5, %c0_12] : memref<8x96xf32, #tpu.memory_space<vmem>>, vector<1x32xf32>
    %c6 = arith.constant 6 : index
    %c0_13 = arith.constant 0 : index
    %11 = vector.load %arg3[%c6, %c0_13] : memref<8x96xf32, #tpu.memory_space<vmem>>, vector<1x32xf32>
    %c7 = arith.constant 7 : index
    %c0_14 = arith.constant 0 : index
    %12 = vector.load %arg3[%c7, %c0_14] : memref<8x96xf32, #tpu.memory_space<vmem>>, vector<1x32xf32>
    %c0_15 = arith.constant 0 : index
    %c0_16 = arith.constant 0 : index
    %13 = vector.load %arg4[%c0_15, %c0_16] : memref<176x64xf32, #tpu.memory_space<vmem>>, vector<32x64xf32>
    %c32_17 = arith.constant 32 : index
    %c0_18 = arith.constant 0 : index
    %14 = vector.load %arg4[%c32_17, %c0_18] : memref<176x64xf32, #tpu.memory_space<vmem>>, vector<64x64xf32>
    %c96_19 = arith.constant 96 : index
    %c0_20 = arith.constant 0 : index
    %15 = vector.load %arg4[%c96_19, %c0_20] : memref<176x64xf32, #tpu.memory_space<vmem>>, vector<16x64xf32>
    %c112 = arith.constant 112 : index
    %c0_21 = arith.constant 0 : index
    %16 = vector.load %arg4[%c112, %c0_21] : memref<176x64xf32, #tpu.memory_space<vmem>>, vector<64x32xf32>
    %cst = arith.constant dense<0.000000e+00> : vector<16x96xf32>
    %17 = tpu.matmul %0, %1, %cst {dimension_numbers = #tpu.dot_dimension_numbers<[1], [0], [0], [1], [0, 0, 1, 1], [], []>} : vector<16x32xf32>, vector<32x96xf32>, vector<16x96xf32> -> vector<16x96xf32>
    %18 = vector.broadcast %5 : vector<1x96xf32> to vector<16x96xf32>
    %19 = arith.addf %17, %18 : vector<16x96xf32>
    %20 = vector.extract_strided_slice %19 {offsets = [0, 0], sizes = [16, 32], strides = [1, 1]} : vector<16x96xf32> to vector<16x32xf32>
    %21 = vector.extract_strided_slice %19 {offsets = [0, 32], sizes = [16, 32], strides = [1, 1]} : vector<16x96xf32> to vector<16x32xf32>
    %22 = vector.extract_strided_slice %19 {offsets = [0, 64], sizes = [16, 32], strides = [1, 1]} : vector<16x96xf32> to vector<16x32xf32>
    %23 = tpu.transpose %21, [1, 0] : vector<16x32xf32> -> vector<32x16xf32>
    %24 = tpu.concatenate %23, %23, %23, %23 in 1 : vector<32x16xf32>, vector<32x16xf32>, vector<32x16xf32>, vector<32x16xf32> -> vector<32x64xf32>
    %25 = arith.mulf %24, %13 : vector<32x64xf32>
    %cst_22 = arith.constant dense<0.000000e+00> : vector<16x64xf32>
    %26 = tpu.matmul %20, %25, %cst_22 {dimension_numbers = #tpu.dot_dimension_numbers<[1], [0], [0], [1], [0, 0, 1, 1], [], []>} : vector<16x32xf32>, vector<32x64xf32>, vector<16x64xf32> -> vector<16x64xf32>
    %27 = arith.addf %26, %15 : vector<16x64xf32>
    %cst_23 = arith.constant dense<0xFF800000> : vector<16xf32>
    %28 = vector.multi_reduction <maximumf>, %27, %cst_23 [1] : vector<16x64xf32> to vector<16xf32>
    %29 = vector.shape_cast %28 : vector<16xf32> to vector<16x1xf32>
    %30 = vector.broadcast %29 : vector<16x1xf32> to vector<16x64xf32>
    %31 = arith.subf %27, %30 : vector<16x64xf32>
    %32 = math.exp %31 : vector<16x64xf32>
    %cst_24 = arith.constant dense<0.000000e+00> : vector<16x64xf32>
    %33 = tpu.matmul %32, %14, %cst_24 {dimension_numbers = #tpu.dot_dimension_numbers<[1], [0], [0], [1], [0, 0, 1, 1], [], []>} : vector<16x64xf32>, vector<64x64xf32>, vector<16x64xf32> -> vector<16x64xf32>
    %cst_25 = arith.constant 1.000000e-30 : f32
    %34 = vector.broadcast %cst_25 : f32 to vector<16x64xf32>
    %35 = arith.maximumf %33, %34 : vector<16x64xf32>
    %36 = tpu.reciprocal %35 {approx = true} : vector<16x64xf32> -> vector<16x64xf32>
    %37 = arith.mulf %32, %36 : vector<16x64xf32>
    %38 = tpu.concatenate %22, %22, %22, %22 in 0 : vector<16x32xf32>, vector<16x32xf32>, vector<16x32xf32>, vector<16x32xf32> -> vector<64x32xf32>
    %39 = arith.mulf %38, %16 : vector<64x32xf32>
    %cst_26 = arith.constant dense<0.000000e+00> : vector<16x32xf32>
    %40 = tpu.matmul %37, %39, %cst_26 {dimension_numbers = #tpu.dot_dimension_numbers<[1], [0], [0], [1], [0, 0, 1, 1], [], []>} : vector<16x64xf32>, vector<64x32xf32>, vector<16x32xf32> -> vector<16x32xf32>
    %cst_27 = arith.constant dense<0.000000e+00> : vector<16x32xf32>
    %41 = tpu.matmul %40, %2, %cst_27 {dimension_numbers = #tpu.dot_dimension_numbers<[1], [0], [0], [1], [0, 0, 1, 1], [], []>} : vector<16x32xf32>, vector<32x32xf32>, vector<16x32xf32> -> vector<16x32xf32>
    %42 = vector.broadcast %6 : vector<1x32xf32> to vector<16x32xf32>
    %43 = arith.addf %41, %42 : vector<16x32xf32>
    %44 = arith.addf %0, %43 : vector<16x32xf32>
    %cst_28 = arith.constant dense<0.000000e+00> : vector<16xf32>
    %45 = vector.multi_reduction <add>, %44, %cst_28 [1] : vector<16x32xf32> to vector<16xf32>
    %46 = vector.shape_cast %45 : vector<16xf32> to vector<16x1xf32>
    %cst_29 = arith.constant 3.200000e+01 : f32
    %47 = vector.broadcast %cst_29 : f32 to vector<16x1xf32>
    %48 = arith.divf %46, %47 : vector<16x1xf32>
    %49 = vector.broadcast %48 : vector<16x1xf32> to vector<16x32xf32>
    %50 = arith.subf %44, %49 : vector<16x32xf32>
    %51 = vector.broadcast %48 : vector<16x1xf32> to vector<16x32xf32>
    %52 = arith.subf %44, %51 : vector<16x32xf32>
    %53 = arith.mulf %50, %52 : vector<16x32xf32>
    %cst_30 = arith.constant dense<0.000000e+00> : vector<16xf32>
    %54 = vector.multi_reduction <add>, %53, %cst_30 [1] : vector<16x32xf32> to vector<16xf32>
    %55 = vector.shape_cast %54 : vector<16xf32> to vector<16x1xf32>
    %cst_31 = arith.constant 3.200000e+01 : f32
    %56 = vector.broadcast %cst_31 : f32 to vector<16x1xf32>
    %57 = arith.divf %55, %56 : vector<16x1xf32>
    %58 = vector.broadcast %48 : vector<16x1xf32> to vector<16x32xf32>
    %59 = arith.subf %44, %58 : vector<16x32xf32>
    %cst_32 = arith.constant 9.99999974E-6 : f32
    %60 = vector.broadcast %cst_32 : f32 to vector<16x1xf32>
    %61 = arith.addf %57, %60 : vector<16x1xf32>
    %62 = math.rsqrt %61 : vector<16x1xf32>
    %63 = vector.broadcast %62 : vector<16x1xf32> to vector<16x32xf32>
    %64 = arith.mulf %59, %63 : vector<16x32xf32>
    %65 = vector.broadcast %9 : vector<1x32xf32> to vector<16x32xf32>
    %66 = arith.mulf %64, %65 : vector<16x32xf32>
    %67 = vector.broadcast %10 : vector<1x32xf32> to vector<16x32xf32>
    %68 = arith.addf %66, %67 : vector<16x32xf32>
    %cst_33 = arith.constant dense<0.000000e+00> : vector<16x64xf32>
    %69 = tpu.matmul %68, %3, %cst_33 {dimension_numbers = #tpu.dot_dimension_numbers<[1], [0], [0], [1], [0, 0, 1, 1], [], []>} : vector<16x32xf32>, vector<32x64xf32>, vector<16x64xf32> -> vector<16x64xf32>
    %70 = vector.broadcast %7 : vector<1x64xf32> to vector<16x64xf32>
    %71 = arith.addf %69, %70 : vector<16x64xf32>
    %cst_34 = arith.constant 0.000000e+00 : f32
    %72 = vector.broadcast %cst_34 : f32 to vector<16x64xf32>
    %73 = arith.maximumf %71, %72 : vector<16x64xf32>
    %cst_35 = arith.constant dense<0.000000e+00> : vector<16x32xf32>
    %74 = tpu.matmul %73, %4, %cst_35 {dimension_numbers = #tpu.dot_dimension_numbers<[1], [0], [0], [1], [0, 0, 1, 1], [], []>} : vector<16x64xf32>, vector<64x32xf32>, vector<16x32xf32> -> vector<16x32xf32>
    %75 = vector.broadcast %8 : vector<1x32xf32> to vector<16x32xf32>
    %76 = arith.addf %74, %75 : vector<16x32xf32>
    %77 = arith.addf %68, %76 : vector<16x32xf32>
    %cst_36 = arith.constant dense<0.000000e+00> : vector<16xf32>
    %78 = vector.multi_reduction <add>, %77, %cst_36 [1] : vector<16x32xf32> to vector<16xf32>
    %79 = vector.shape_cast %78 : vector<16xf32> to vector<16x1xf32>
    %cst_37 = arith.constant 3.200000e+01 : f32
    %80 = vector.broadcast %cst_37 : f32 to vector<16x1xf32>
    %81 = arith.divf %79, %80 : vector<16x1xf32>
    %82 = vector.broadcast %81 : vector<16x1xf32> to vector<16x32xf32>
    %83 = arith.subf %77, %82 : vector<16x32xf32>
    %84 = vector.broadcast %81 : vector<16x1xf32> to vector<16x32xf32>
    %85 = arith.subf %77, %84 : vector<16x32xf32>
    %86 = arith.mulf %83, %85 : vector<16x32xf32>
    %cst_38 = arith.constant dense<0.000000e+00> : vector<16xf32>
    %87 = vector.multi_reduction <add>, %86, %cst_38 [1] : vector<16x32xf32> to vector<16xf32>
    %88 = vector.shape_cast %87 : vector<16xf32> to vector<16x1xf32>
    %cst_39 = arith.constant 3.200000e+01 : f32
    %89 = vector.broadcast %cst_39 : f32 to vector<16x1xf32>
    %90 = arith.divf %88, %89 : vector<16x1xf32>
    %91 = vector.broadcast %81 : vector<16x1xf32> to vector<16x32xf32>
    %92 = arith.subf %77, %91 : vector<16x32xf32>
    %cst_40 = arith.constant 9.99999974E-6 : f32
    %93 = vector.broadcast %cst_40 : f32 to vector<16x1xf32>
    %94 = arith.addf %90, %93 : vector<16x1xf32>
    %95 = math.rsqrt %94 : vector<16x1xf32>
    %96 = vector.broadcast %95 : vector<16x1xf32> to vector<16x32xf32>
    %97 = arith.mulf %92, %96 : vector<16x32xf32>
    %98 = vector.broadcast %11 : vector<1x32xf32> to vector<16x32xf32>
    %99 = arith.mulf %97, %98 : vector<16x32xf32>
    %100 = vector.broadcast %12 : vector<1x32xf32> to vector<16x32xf32>
    %101 = arith.addf %99, %100 : vector<16x32xf32>
    %c0_41 = arith.constant 0 : index
    %c0_42 = arith.constant 0 : index
    %102 = vector.load %arg5[%c0_41, %c0_42] : memref<16x32xf32, #tpu.memory_space<vmem>>, vector<16x32xf32>
    tpu.vector_store %arg5[%c0_41, %c0_42], %101 {strides = array<i32>} : memref<16x32xf32, #tpu.memory_space<vmem>>, vector<16x32xf32>,
    return
  }
  func.func @transform_0(%arg0: i32) -> (i32, i32) {
    %c0_i32 = arith.constant 0 : i32
    %c0_i32_0 = arith.constant 0 : i32
    %c0_i32_1 = arith.constant 0 : i32
    return %c0_i32, %c0_i32_0 : i32, i32
  }
  func.func @transform_1(%arg0: i32) -> (i32, i32) {
    %c0_i32 = arith.constant 0 : i32
    %c0_i32_0 = arith.constant 0 : i32
    %c0_i32_1 = arith.constant 0 : i32
    return %c0_i32, %c0_i32_0 : i32, i32
  }
  func.func @transform_2(%arg0: i32) -> (i32, i32) {
    %c0_i32 = arith.constant 0 : i32
    %c0_i32_0 = arith.constant 0 : i32
    %c0_i32_1 = arith.constant 0 : i32
    return %c0_i32, %c0_i32_0 : i32, i32
  }
  func.func @transform_3(%arg0: i32) -> (i32, i32) {
    %c0_i32 = arith.constant 0 : i32
    %c0_i32_0 = arith.constant 0 : i32
    %c0_i32_1 = arith.constant 0 : i32
    return %c0_i32, %c0_i32_0 : i32, i32
  }
  func.func @transform_4(%arg0: i32) -> (i32, i32) {
    %c0_i32 = arith.constant 0 : i32
    %c0_i32_0 = arith.constant 0 : i32
    %c0_i32_1 = arith.constant 0 : i32
    return %c0_i32, %c0_i32_0 : i32, i32
  }
}

</mosaic_0001>

<llo_original>
// kernel: tpu_custom_call.1
$region0: #{tpu_custom_call.1}
  #allocation0 [shape = 'u32[]', space=smem, size = 0x4, offset = 0x4, fixed_abs, tag = 'smem constant byte address 0x4 - core index']
  #allocation1 [shape = 'u32[144,128]{1,0:T(1,128)}', space=vmem, size = 0x12000, scoped, tag = 'internal scratch']
  %s0 = inlined_call_operand.vmem [shape: f32[16,32], index: 0, kind: input, shape index: {}]
  %s1 = inlined_call_operand.vmem [shape: f32[160,96], index: 1, kind: input, shape index: {}]
  %s2 = inlined_call_operand.vmem [shape: f32[8,96], index: 2, kind: input, shape index: {}]
  %s3 = inlined_call_operand.vmem [shape: f32[176,64], index: 3, kind: input, shape index: {}]
  %s4 = inlined_call_operand.hbm [shape: f32[16,32], index: 4, kind: output, shape index: {}]
  %s5 = sld [smem:[#allocation0]]
  $region26: #{tpu_custom_call.1} parent=0
    _
  %s7 = ssub.s32 1, %s5
  %s8 = scalar_select 0, %s7, %s5
  $region1: #{tpu_custom_call.1} parent=0
    #allocation2 [shape = 'u8[8192]{0}', space=vmem, size = 0x2000, scoped, tag = 'output window, operand 0, single buffered']
    #allocation3 [shape = 's32[1]{0}', space=sflag, size = 0x4, scoped, tag = 'scoped memory for tpu_custom_call.1']
    %9 = vsyncpa [#allocation3], 0
    // Predicated region
    $region2: #{tpu_custom_call.1} parent=1 // pred_check
      _
    $region3: #{tpu_custom_call.1} parent=1 // pred_check_branch
      %11 = sbr.rel (0) target = $region5
    $region4: #{tpu_custom_call.1} parent=1 // pred_region
      _
    $region5: #{tpu_custom_call.1} parent=1 // pred_fallthru
      _
    // Predicated region
    $region6: #{tpu_custom_call.1} parent=1 // pred_check
      _
    $region7: #{tpu_custom_call.1} parent=1 // pred_check_branch
      %13 = sbr.rel (0) target = $region9
    $region8: #{tpu_custom_call.1} parent=1 // pred_region
      _
    $region9: #{tpu_custom_call.1} parent=1 // pred_fallthru
      _
    // Predicated region
    $region10: #{tpu_custom_call.1} parent=1 // pred_check
      _
    $region11: #{tpu_custom_call.1} parent=1 // pred_check_branch
      %15 = sbr.rel (0) target = $region13
    $region12: #{tpu_custom_call.1} parent=1 // pred_region
      _
    $region13: #{tpu_custom_call.1} parent=1 // pred_fallthru
      _
    // Predicated region
    $region14: #{tpu_custom_call.1} parent=1 // pred_check
      _
    $region15: #{tpu_custom_call.1} parent=1 // pred_check_branch
      %17 = sbr.rel (0) target = $region17
    $region16: #{tpu_custom_call.1} parent=1 // pred_region
      _
    $region17: #{tpu_custom_call.1} parent=1 // pred_fallthru
      _
    %v18 = vld [vmem:[%s0] sm:$0xff]
    %v19 = vld [vmem:[%s0 + $0x8] sm:$0xff]
    %v20 = vld [vmem:[%s1] sm:$0xff]
    %v21 = vld [vmem:[%s1 + $0x8] sm:$0xff]
    %v22 = vld [vmem:[%s1 + $0x10] sm:$0xff]
    %v23 = vld [vmem:[%s1 + $0x18] sm:$0xff]
    %v24 = vld [vmem:[%s1 + $0x20] sm:$0xff]
    %v25 = vld [vmem:[%s1 + $0x28] sm:$0xff]
    %v26 = vld [vmem:[%s1 + $0x30] sm:$0xff]
    %v27 = vld [vmem:[%s1 + $0x38] sm:$0xff]
    %v28 = vld [vmem:[%s1 + $0x40] sm:$0xff]
    %v29 = vld [vmem:[%s1 + $0x48] sm:$0xff]
    %v30 = vld [vmem:[%s1 + $0x50] sm:$0xff]
    %v31 = vld [vmem:[%s1 + $0x58] sm:$0xff]
    %v32 = vld [vmem:[%s1 + $0x60] sm:$0xff]
    %v33 = vld [vmem:[%s1 + $0x68] sm:$0xff]
    %v34 = vld [vmem:[%s1 + $0x70] sm:$0xff]
    %v35 = vld [vmem:[%s1 + $0x78] sm:$0xff]
    %v36 = vld [vmem:[%s1 + $0x80] sm:$0xff]
    %v37 = vld [vmem:[%s1 + $0x88] sm:$0xff]
    %v38 = vld [vmem:[%s1 + $0x90] sm:$0xff]
    %v39 = vld [vmem:[%s1 + $0x98] sm:$0xff]
    %v40 = vld [vmem:[%s2] sm:$0x1]
    %v41 = vld [vmem:[%s2 + $0x1] sm:$0x1]
    %v42 = vld [vmem:[%s2 + $0x2] sm:$0x1]
    %v43 = vld [vmem:[%s2 + $0x3] sm:$0x1]
    %v44 = vld [vmem:[%s2 + $0x4] sm:$0x1]
    %v45 = vld [vmem:[%s2 + $0x5] sm:$0x1]
    %v46 = vld [vmem:[%s2 + $0x6] sm:$0x1]
    %v47 = vld [vmem:[%s2 + $0x7] sm:$0x1]
    %v48 = vld [vmem:[%s3] sm:$0xff]
    %v49 = vld [vmem:[%s3 + $0x8] sm:$0xff]
    %v50 = vld [vmem:[%s3 + $0x10] sm:$0xff]
    %v51 = vld [vmem:[%s3 + $0x18] sm:$0xff]
    %v52 = vld [vmem:[%s3 + $0x20] sm:$0xff]
    %v53 = vld [vmem:[%s3 + $0x28] sm:$0xff]
    %v54 = vld [vmem:[%s3 + $0x30] sm:$0xff]
    %v55 = vld [vmem:[%s3 + $0x38] sm:$0xff]
    %v56 = vld [vmem:[%s3 + $0x40] sm:$0xff]
    %v57 = vld [vmem:[%s3 + $0x48] sm:$0xff]
    %v58 = vld [vmem:[%s3 + $0x50] sm:$0xff]
    %v59 = vld [vmem:[%s3 + $0x58] sm:$0xff]
    %v60 = vld [vmem:[%s3 + $0x60] sm:$0xff]
    %v61 = vld [vmem:[%s3 + $0x68] sm:$0xff]
    %v62 = vld [vmem:[%s3 + $0x70] sm:$0xff]
    %v63 = vld [vmem:[%s3 + $0x78] sm:$0xff]
    %v64 = vld [vmem:[%s3 + $0x80] sm:$0xff]
    %v65 = vld [vmem:[%s3 + $0x88] sm:$0xff]
    %v66 = vld [vmem:[%s3 + $0x90] sm:$0xff]
    %v67 = vld [vmem:[%s3 + $0x98] sm:$0xff]
    %v68 = vld [vmem:[%s3 + $0xa0] sm:$0xff]
    %v69 = vld [vmem:[%s3 + $0xa8] sm:$0xff]
    %v70 = vlaneseq
    %v71 = vshrl.u32 %v70, 7
    %v72 = vsub.s32 0, %v71
    %v73 = vrot.slane %v40, %v72
    %vm74 = vcmask 261120
    %v76 = vsel %vm74, %v18, 0
    %v79 = vsel %vm74, %v19, 0
    %81 = vmatprep.subr.mxu0 0.0
    %82 = vmatpush1.msra.mxu0 0.0
    %83 = vmatprep.subr.mxu0 0.0
    %84 = vmatpush1.msra.mxu0 0.0
    %85 = vmatprep.subr.mxu0 0.0
    %86 = vmatpush1.msra.mxu0 0.0
    %87 = vmatprep.subr.mxu0 0.0
    %88 = vmatpush1.msra.mxu0 0.0
    %89 = vmatprep.subr.mxu0 0.0
    %90 = vmatpush1.msra.mxu0 0.0
    %91 = vmatprep.subr.mxu0 0.0
    %92 = vmatpush1.msra.mxu0 0.0
    %93 = vmatprep.subr.mxu0 0.0
    %94 = vmatpush1.msra.mxu0 0.0
    %95 = vmatprep.subr.mxu0 0.0
    %96 = vmatpush1.msra.mxu0 0.0
    %97 = vmatprep.subr.mxu0 0.0
    %98 = vmatpush1.msra.mxu0 0.0
    %99 = vmatprep.subr.mxu0 0.0
    %100 = vmatpush1.msra.mxu0 0.0
    %101 = vmatprep.subr.mxu0 0.0
    %102 = vmatpush1.msra.mxu0 0.0
    %103 = vmatprep.subr.mxu0 0.0
    %104 = vmatpush1.msra.mxu0 0.0
    %105 = vmatprep.subr.mxu0 0.0
    %106 = vmatpush1.msra.mxu0 %v23
    %107 = vmatprep.subr.mxu0 0.0
    %108 = vmatpush1.msra.mxu0 %v22
    %109 = vmatprep.subr.mxu0 0.0
    %110 = vmatpush1.msra.mxu0 %v21
    %111 = vmatprep.subr.mxu0 0.0
    %112 = vmatpush1.msra.mxu0 %v20
    %113 = vmatprep.subr.mxu0 0.0
    %114 = vmatpush2.msra.mxu0 0.0
    %115 = vmatprep.subr.mxu0 0.0
    %116 = vmatpush2.msra.mxu0 0.0
    %117 = vmatprep.subr.mxu0 0.0
    %118 = vmatpush2.msra.mxu0 0.0
    %119 = vmatprep.subr.mxu0 0.0
    %120 = vmatpush2.msra.mxu0 0.0
    %121 = vmatprep.subr.mxu0 0.0
    %122 = vmatpush2.msra.mxu0 0.0
    %123 = vmatprep.subr.mxu0 0.0
    %124 = vmatpush2.msra.mxu0 0.0
    %125 = vmatprep.subr.mxu0 0.0
    %126 = vmatpush2.msra.mxu0 0.0
    %127 = vmatprep.subr.mxu0 0.0
    %128 = vmatpush2.msra.mxu0 0.0
    %129 = vmatprep.subr.mxu0 0.0
    %130 = vmatpush2.msra.mxu0 0.0
    %131 = vmatprep.subr.mxu0 0.0
    %132 = vmatpush2.msra.mxu0 0.0
    %133 = vmatprep.subr.mxu0 0.0
    %134 = vmatpush2.msra.mxu0 0.0
    %135 = vmatprep.subr.mxu0 0.0
    %136 = vmatpush2.msra.mxu0 0.0
    %137 = vmatprep.subr.mxu0 0.0
    %138 = vmatpush2.msra.mxu0 0.0
    %139 = vmatprep.subr.mxu0 0.0
    %140 = vmatpush2.msra.mxu0 0.0
    %141 = vmatprep.subr.mxu0 0.0
    %142 = vmatpush2.msra.mxu0 0.0
    %143 = vmatprep.subr.mxu0 0.0
    %144 = vmatpush2.msra.mxu0 0.0
    %145 = vmatprep.mubr.f32.mxu0 0.0
    %146 = vmatmul.mubr.f32.gmra.mxu0 %v76
    %v147 = vpop.f32.mrf.mxu0
    %v148 = vadd.f32 %v73, %v147
    %v149 = vpop.f32.mrf.mxu0
    %150 = vmatprep.mubr.f32.mxu0 0.0
    %151 = vmatmul.mubr.f32.gmra.mxu0 %v79
    %v152 = vpop.f32.mrf.mxu0
    %v153 = vadd.f32 %v73, %v152
    %v154 = vpop.f32.mrf.mxu0
    %155 = vdwg.mxu0
    %158 = vrot.lane.b32.xlu0 %v148, 96
    %v159 = vpop.permute.xlu0 %158
    %160 = vrot.lane.b32.xlu0 %v153, 96
    %v161 = vpop.permute.xlu0 %160
    %164 = vxpose.xlu0.b32.start [1/16] %v159, 128
    %165 = vxpose.xlu0.b32.cont [2/16] %v161, 128
    %166 = vxpose.xlu0.b32.cont [3/16] 0.0, 128
    %167 = vxpose.xlu0.b32.cont [4/16] 0.0, 128
    %168 = vxpose.xlu0.b32.cont [5/16] 0.0, 128
    %169 = vxpose.xlu0.b32.cont [6/16] 0.0, 128
    %170 = vxpose.xlu0.b32.cont [7/16] 0.0, 128
    %171 = vxpose.xlu0.b32.cont [8/16] 0.0, 128
    %172 = vxpose.xlu0.b32.cont [9/16] 0.0, 128
    %173 = vxpose.xlu0.b32.cont [10/16] 0.0, 128
    %174 = vxpose.xlu0.b32.cont [11/16] 0.0, 128
    %175 = vxpose.xlu0.b32.cont [12/16] 0.0, 128
    %176 = vxpose.xlu0.b32.cont [13/16] 0.0, 128
    %177 = vxpose.xlu0.b32.cont [14/16] 0.0, 128
    %178 = vxpose.xlu0.b32.cont [15/16] 0.0, 128
    %179 = vxpose.xlu0.b32.end [16/16] 0.0, 128
    %v180 = vpop.trf.xlu0
    %v181 = vpop.trf.xlu0
    %v182 = vpop.trf.xlu0
    %v183 = vpop.trf.xlu0
    %v184 = vpop.trf.xlu0
    %v185 = vpop.trf.xlu0
    %v186 = vpop.trf.xlu0
    %v187 = vpop.trf.xlu0
    %v188 = vpop.trf.xlu0
    %v189 = vpop.trf.xlu0
    %v190 = vpop.trf.xlu0
    %v191 = vpop.trf.xlu0
    %v192 = vpop.trf.xlu0
    %v193 = vpop.trf.xlu0
    %v194 = vpop.trf.xlu0
    %v195 = vpop.trf.xlu0
    %200 = vrot.lane.b32.xlu0 %v180, 16
    %v201 = vpop.permute.xlu0 %200
    %202 = vrot.lane.b32.xlu0 %v181, 16
    %v203 = vpop.permute.xlu0 %202
    %204 = vrot.lane.b32.xlu0 %v182, 16
    %v205 = vpop.permute.xlu0 %204
    %206 = vrot.lane.b32.xlu0 %v183, 16
    %v207 = vpop.permute.xlu0 %206
    %212 = vrot.lane.b32.xlu0 %v180, 32
    %v213 = vpop.permute.xlu0 %212
    %214 = vrot.lane.b32.xlu0 %v181, 32
    %v215 = vpop.permute.xlu0 %214
    %216 = vrot.lane.b32.xlu0 %v182, 32
    %v217 = vpop.permute.xlu0 %216
    %218 = vrot.lane.b32.xlu0 %v183, 32
    %v219 = vpop.permute.xlu0 %218
    %224 = vrot.lane.b32.xlu0 %v180, 48
    %v225 = vpop.permute.xlu0 %224
    %226 = vrot.lane.b32.xlu0 %v181, 48
    %v227 = vpop.permute.xlu0 %226
    %228 = vrot.lane.b32.xlu0 %v182, 48
    %v229 = vpop.permute.xlu0 %228
    %230 = vrot.lane.b32.xlu0 %v183, 48
    %v231 = vpop.permute.xlu0 %230
    %vm236 = vcmask 130048
    %v237 = vsel %vm236, %v180, %v201
    %v238 = vsel %vm236, %v181, %v203
    %v239 = vsel %vm236, %v182, %v205
    %v240 = vsel %vm236, %v183, %v207
    %v241 = vsel %vm74, %v237, %v213
    %v242 = vsel %vm74, %v238, %v215
    %v243 = vsel %vm74, %v239, %v217
    %v244 = vsel %vm74, %v240, %v219
    %vm245 = vcmask 392192
    %v246 = vsel %vm245, %v241, %v225
    %v247 = vsel %vm245, %v242, %v227
    %v248 = vsel %vm245, %v243, %v229
    %v249 = vsel %vm245, %v244, %v231
    %v250 = vmul.f32 %v246, %v48
    %v251 = vmul.f32 %v247, %v49
    %v252 = vmul.f32 %v248, %v50
    %v253 = vmul.f32 %v249, %v51
    %v254 = vsel %vm74, %v148, 0
    %v256 = vsel %vm74, %v153, 0
    %258 = vmatprep.subr.mxu0 0.0
    %259 = vmatpush1.msra.mxu0 0.0
    %260 = vmatprep.subr.mxu0 0.0
    %261 = vmatpush1.msra.mxu0 0.0
    %262 = vmatprep.subr.mxu0 0.0
    %263 = vmatpush1.msra.mxu0 0.0
    %264 = vmatprep.subr.mxu0 0.0
    %265 = vmatpush1.msra.mxu0 0.0
    %266 = vmatprep.subr.mxu0 0.0
    %267 = vmatpush1.msra.mxu0 0.0
    %268 = vmatprep.subr.mxu0 0.0
    %269 = vmatpush1.msra.mxu0 0.0
    %270 = vmatprep.subr.mxu0 0.0
    %271 = vmatpush1.msra.mxu0 0.0
    %272 = vmatprep.subr.mxu0 0.0
    %273 = vmatpush1.msra.mxu0 0.0
    %274 = vmatprep.subr.mxu0 0.0
    %275 = vmatpush1.msra.mxu0 0.0
    %276 = vmatprep.subr.mxu0 0.0
    %277 = vmatpush1.msra.mxu0 0.0
    %278 = vmatprep.subr.mxu0 0.0
    %279 = vmatpush1.msra.mxu0 0.0
    %280 = vmatprep.subr.mxu0 0.0
    %281 = vmatpush1.msra.mxu0 0.0
    %282 = vmatprep.subr.mxu0 0.0
    %283 = vmatpush1.msra.mxu0 %v253
    %284 = vmatprep.subr.mxu0 0.0
    %285 = vmatpush1.msra.mxu0 %v252
    %286 = vmatprep.subr.mxu0 0.0
    %287 = vmatpush1.msra.mxu0 %v251
    %288 = vmatprep.subr.mxu0 0.0
    %289 = vmatpush1.msra.mxu0 %v250
    %290 = vmatprep.subr.mxu0 0.0
    %291 = vmatpush2.msra.mxu0 0.0
    %292 = vmatprep.subr.mxu0 0.0
    %293 = vmatpush2.msra.mxu0 0.0
    %294 = vmatprep.subr.mxu0 0.0
    %295 = vmatpush2.msra.mxu0 0.0
    %296 = vmatprep.subr.mxu0 0.0
    %297 = vmatpush2.msra.mxu0 0.0
    %298 = vmatprep.subr.mxu0 0.0
    %299 = vmatpush2.msra.mxu0 0.0
    %300 = vmatprep.subr.mxu0 0.0
    %301 = vmatpush2.msra.mxu0 0.0
    %302 = vmatprep.subr.mxu0 0.0
    %303 = vmatpush2.msra.mxu0 0.0
    %304 = vmatprep.subr.mxu0 0.0
    %305 = vmatpush2.msra.mxu0 0.0
    %306 = vmatprep.subr.mxu0 0.0
    %307 = vmatpush2.msra.mxu0 0.0
    %308 = vmatprep.subr.mxu0 0.0
    %309 = vmatpush2.msra.mxu0 0.0
    %310 = vmatprep.subr.mxu0 0.0
    %311 = vmatpush2.msra.mxu0 0.0
    %312 = vmatprep.subr.mxu0 0.0
    %313 = vmatpush2.msra.mxu0 0.0
    %314 = vmatprep.subr.mxu0 0.0
    %315 = vmatpush2.msra.mxu0 0.0
    %316 = vmatprep.subr.mxu0 0.0
    %317 = vmatpush2.msra.mxu0 0.0
    %318 = vmatprep.subr.mxu0 0.0
    %319 = vmatpush2.msra.mxu0 0.0
    %320 = vmatprep.subr.mxu0 0.0
    %321 = vmatpush2.msra.mxu0 0.0
    %322 = vmatprep.mubr.f32.mxu0 0.0
    %323 = vmatmul.mubr.f32.gmra.mxu0 %v254
    %v324 = vpop.f32.mrf.mxu0
    %v325 = vadd.f32 %v60, %v324
    %v326 = vpop.f32.mrf.mxu0
    %327 = vmatprep.mubr.f32.mxu0 0.0
    %328 = vmatmul.mubr.f32.gmra.mxu0 %v256
    %v329 = vpop.f32.mrf.mxu0
    %v330 = vadd.f32 %v61, %v329
    %v331 = vpop.f32.mrf.mxu0
    %332 = vdwg.mxu0
    %vm333 = vcmask 523264
    %v334 = vsel %vm333, %v325, -inf
    %335 = vmax.xlane.f32.xlu0 %v334
    %v336 = vpop.xlane.xlu0 %335
    %v337 = vsel %vm333, %v330, -inf
    %338 = vmax.xlane.f32.xlu0 %v337
    %v339 = vpop.xlane.xlu0 %338
    %v340 = vsub.f32 %v325, %v336
    %v341 = vsub.f32 %v330, %v339
    %v342 = vmul.f32 %v340, 1.442695
    %v343 = vpow.pop %v342
    %v344 = vmul.f32 %v341, 1.442695
    %v345 = vpow.pop %v344
    %v347 = vsel %vm333, %v343, 0
    %v350 = vsel %vm333, %v345, 0
    %352 = vmatprep.subr.mxu0 0.0
    %353 = vmatpush1.msra.mxu0 0.0
    %354 = vmatprep.subr.mxu0 0.0
    %355 = vmatpush1.msra.mxu0 0.0
    %356 = vmatprep.subr.mxu0 0.0
    %357 = vmatpush1.msra.mxu0 0.0
    %358 = vmatprep.subr.mxu0 0.0
    %359 = vmatpush1.msra.mxu0 0.0
    %360 = vmatprep.subr.mxu0 0.0
    %361 = vmatpush1.msra.mxu0 0.0
    %362 = vmatprep.subr.mxu0 0.0
    %363 = vmatpush1.msra.mxu0 0.0
    %364 = vmatprep.subr.mxu0 0.0
    %365 = vmatpush1.msra.mxu0 0.0
    %366 = vmatprep.subr.mxu0 0.0
    %367 = vmatpush1.msra.mxu0 0.0
    %368 = vmatprep.subr.mxu0 0.0
    %369 = vmatpush1.msra.mxu0 %v59
    %370 = vmatprep.subr.mxu0 0.0
    %371 = vmatpush1.msra.mxu0 %v58
    %372 = vmatprep.subr.mxu0 0.0
    %373 = vmatpush1.msra.mxu0 %v57
    %374 = vmatprep.subr.mxu0 0.0
    %375 = vmatpush1.msra.mxu0 %v56
    %376 = vmatprep.subr.mxu0 0.0
    %377 = vmatpush1.msra.mxu0 %v55
    %378 = vmatprep.subr.mxu0 0.0
    %379 = vmatpush1.msra.mxu0 %v54
    %380 = vmatprep.subr.mxu0 0.0
    %381 = vmatpush1.msra.mxu0 %v53
    %382 = vmatprep.subr.mxu0 0.0
    %383 = vmatpush1.msra.mxu0 %v52
    %384 = vmatprep.subr.mxu0 0.0
    %385 = vmatpush2.msra.mxu0 0.0
    %386 = vmatprep.subr.mxu0 0.0
    %387 = vmatpush2.msra.mxu0 0.0
    %388 = vmatprep.subr.mxu0 0.0
    %389 = vmatpush2.msra.mxu0 0.0
    %390 = vmatprep.subr.mxu0 0.0
    %391 = vmatpush2.msra.mxu0 0.0
    %392 = vmatprep.subr.mxu0 0.0
    %393 = vmatpush2.msra.mxu0 0.0
    %394 = vmatprep.subr.mxu0 0.0
    %395 = vmatpush2.msra.mxu0 0.0
    %396 = vmatprep.subr.mxu0 0.0
    %397 = vmatpush2.msra.mxu0 0.0
    %398 = vmatprep.subr.mxu0 0.0
    %399 = vmatpush2.msra.mxu0 0.0
    %400 = vmatprep.subr.mxu0 0.0
    %401 = vmatpush2.msra.mxu0 0.0
    %402 = vmatprep.subr.mxu0 0.0
    %403 = vmatpush2.msra.mxu0 0.0
    %404 = vmatprep.subr.mxu0 0.0
    %405 = vmatpush2.msra.mxu0 0.0
    %406 = vmatprep.subr.mxu0 0.0
    %407 = vmatpush2.msra.mxu0 0.0
    %408 = vmatprep.subr.mxu0 0.0
    %409 = vmatpush2.msra.mxu0 0.0
    %410 = vmatprep.subr.mxu0 0.0
    %411 = vmatpush2.msra.mxu0 0.0
    %412 = vmatprep.subr.mxu0 0.0
    %413 = vmatpush2.msra.mxu0 0.0
    %414 = vmatprep.subr.mxu0 0.0
    %415 = vmatpush2.msra.mxu0 0.0
    %416 = vmatprep.mubr.f32.mxu0 0.0
    %417 = vmatmul.mubr.f32.gmra.mxu0 %v347
    %v418 = vpop.f32.mrf.mxu0
    %v419 = vadd.f32 0.0, %v418
    %v420 = vpop.f32.mrf.mxu0
    %421 = vmatprep.mubr.f32.mxu0 0.0
    %422 = vmatmul.mubr.f32.gmra.mxu0 %v350
    %v423 = vpop.f32.mrf.mxu0
    %v424 = vadd.f32 0.0, %v423
    %v425 = vpop.f32.mrf.mxu0
    %426 = vdwg.mxu0
    %v427 = vmax.f32 %v419, 1e-30
    %v428 = vmax.f32 %v424, 1e-30
    %v429 = vrcp.pop %v427
    %v430 = vrcp.pop %v428
    %v431 = vmul.f32 %v343, %v429
    %v432 = vmul.f32 %v345, %v430
    %441 = vrot.lane.b32.xlu0 %v62, 64
    %v442 = vpop.permute.xlu0 %441
    %443 = vrot.lane.b32.xlu0 %v63, 64
    %v444 = vpop.permute.xlu0 %443
    %445 = vrot.lane.b32.xlu0 %v64, 64
    %v446 = vpop.permute.xlu0 %445
    %447 = vrot.lane.b32.xlu0 %v65, 64
    %v448 = vpop.permute.xlu0 %447
    %449 = vrot.lane.b32.xlu0 %v66, 64
    %v450 = vpop.permute.xlu0 %449
    %451 = vrot.lane.b32.xlu0 %v67, 64
    %v452 = vpop.permute.xlu0 %451
    %453 = vrot.lane.b32.xlu0 %v68, 64
    %v454 = vpop.permute.xlu0 %453
    %455 = vrot.lane.b32.xlu0 %v69, 64
    %v456 = vpop.permute.xlu0 %455
    %v465 = vmul.f32 %v148, %v442
    %v466 = vmul.f32 %v153, %v444
    %v467 = vmul.f32 %v148, %v446
    %v468 = vmul.f32 %v153, %v448
    %v469 = vmul.f32 %v148, %v450
    %v470 = vmul.f32 %v153, %v452
    %v471 = vmul.f32 %v148, %v454
    %v472 = vmul.f32 %v153, %v456
    %481 = vrot.lane.b32.xlu0 %v465, 64
    %v482 = vpop.permute.xlu0 %481
    %483 = vrot.lane.b32.xlu0 %v466, 64
    %v484 = vpop.permute.xlu0 %483
    %485 = vrot.lane.b32.xlu0 %v467, 64
    %v486 = vpop.permute.xlu0 %485
    %487 = vrot.lane.b32.xlu0 %v468, 64
    %v488 = vpop.permute.xlu0 %487
    %489 = vrot.lane.b32.xlu0 %v469, 64
    %v490 = vpop.permute.xlu0 %489
    %491 = vrot.lane.b32.xlu0 %v470, 64
    %v492 = vpop.permute.xlu0 %491
    %493 = vrot.lane.b32.xlu0 %v471, 64
    %v494 = vpop.permute.xlu0 %493
    %495 = vrot.lane.b32.xlu0 %v472, 64
    %v496 = vpop.permute.xlu0 %495
    %v506 = vsel %vm333, %v431, 0
    %v509 = vsel %vm333, %v432, 0
    %511 = vmatprep.subr.mxu0 0.0
    %512 = vmatpush1.msra.mxu0 0.0
    %513 = vmatprep.subr.mxu0 0.0
    %514 = vmatpush1.msra.mxu0 0.0
    %515 = vmatprep.subr.mxu0 0.0
    %516 = vmatpush1.msra.mxu0 0.0
    %517 = vmatprep.subr.mxu0 0.0
    %518 = vmatpush1.msra.mxu0 0.0
    %519 = vmatprep.subr.mxu0 0.0
    %520 = vmatpush1.msra.mxu0 0.0
    %521 = vmatprep.subr.mxu0 0.0
    %522 = vmatpush1.msra.mxu0 0.0
    %523 = vmatprep.subr.mxu0 0.0
    %524 = vmatpush1.msra.mxu0 0.0
    %525 = vmatprep.subr.mxu0 0.0
    %526 = vmatpush1.msra.mxu0 0.0
    %527 = vmatprep.subr.mxu0 0.0
    %528 = vmatpush1.msra.mxu0 %v496
    %529 = vmatprep.subr.mxu0 0.0
    %530 = vmatpush1.msra.mxu0 %v494
    %531 = vmatprep.subr.mxu0 0.0
    %532 = vmatpush1.msra.mxu0 %v492
    %533 = vmatprep.subr.mxu0 0.0
    %534 = vmatpush1.msra.mxu0 %v490
    %535 = vmatprep.subr.mxu0 0.0
    %536 = vmatpush1.msra.mxu0 %v488
    %537 = vmatprep.subr.mxu0 0.0
    %538 = vmatpush1.msra.mxu0 %v486
    %539 = vmatprep.subr.mxu0 0.0
    %540 = vmatpush1.msra.mxu0 %v484
    %541 = vmatprep.subr.mxu0 0.0
    %542 = vmatpush1.msra.mxu0 %v482
    %543 = vmatprep.subr.mxu0 0.0
    %544 = vmatpush2.msra.mxu0 0.0
    %545 = vmatprep.subr.mxu0 0.0
    %546 = vmatpush2.msra.mxu0 0.0
    %547 = vmatprep.subr.mxu0 0.0
    %548 = vmatpush2.msra.mxu0 0.0
    %549 = vmatprep.subr.mxu0 0.0
    %550 = vmatpush2.msra.mxu0 0.0
    %551 = vmatprep.subr.mxu0 0.0
    %552 = vmatpush2.msra.mxu0 0.0
    %553 = vmatprep.subr.mxu0 0.0
    %554 = vmatpush2.msra.mxu0 0.0
    %555 = vmatprep.subr.mxu0 0.0
    %556 = vmatpush2.msra.mxu0 0.0
    %557 = vmatprep.subr.mxu0 0.0
    %558 = vmatpush2.msra.mxu0 0.0
    %559 = vmatprep.subr.mxu0 0.0
    %560 = vmatpush2.msra.mxu0 0.0
    %561 = vmatprep.subr.mxu0 0.0
    %562 = vmatpush2.msra.mxu0 0.0
    %563 = vmatprep.subr.mxu0 0.0
    %564 = vmatpush2.msra.mxu0 0.0
    %565 = vmatprep.subr.mxu0 0.0
    %566 = vmatpush2.msra.mxu0 0.0
    %567 = vmatprep.subr.mxu0 0.0
    %568 = vmatpush2.msra.mxu0 0.0
    %569 = vmatprep.subr.mxu0 0.0
    %570 = vmatpush2.msra.mxu0 0.0
    %571 = vmatprep.subr.mxu0 0.0
    %572 = vmatpush2.msra.mxu0 0.0
    %573 = vmatprep.subr.mxu0 0.0
    %574 = vmatpush2.msra.mxu0 0.0
    %575 = vmatprep.mubr.f32.mxu0 0.0
    %576 = vmatmul.mubr.f32.gmra.mxu0 %v506
    %v577 = vpop.f32.mrf.mxu0
    %v578 = vadd.f32 0.0, %v577
    %v579 = vpop.f32.mrf.mxu0
    %580 = vmatprep.mubr.f32.mxu0 0.0
    %581 = vmatmul.mubr.f32.gmra.mxu0 %v509
    %v582 = vpop.f32.mrf.mxu0
    %v583 = vadd.f32 0.0, %v582
    %v584 = vpop.f32.mrf.mxu0
    %585 = vdwg.mxu0
    %v586 = vlaneseq
    %v587 = vshrl.u32 %v586, 7
    %v588 = vsub.s32 0, %v587
    %v589 = vrot.slane %v41, %v588
    %v591 = vsel %vm74, %v578, 0
    %v594 = vsel %vm74, %v583, 0
    %596 = vmatprep.subr.mxu0 0.0
    %597 = vmatpush1.msra.mxu0 0.0
    %598 = vmatprep.subr.mxu0 0.0
    %599 = vmatpush1.msra.mxu0 0.0
    %600 = vmatprep.subr.mxu0 0.0
    %601 = vmatpush1.msra.mxu0 0.0
    %602 = vmatprep.subr.mxu0 0.0
    %603 = vmatpush1.msra.mxu0 0.0
    %604 = vmatprep.subr.mxu0 0.0
    %605 = vmatpush1.msra.mxu0 0.0
    %606 = vmatprep.subr.mxu0 0.0
    %607 = vmatpush1.msra.mxu0 0.0
    %608 = vmatprep.subr.mxu0 0.0
    %609 = vmatpush1.msra.mxu0 0.0
    %610 = vmatprep.subr.mxu0 0.0
    %611 = vmatpush1.msra.mxu0 0.0
    %612 = vmatprep.subr.mxu0 0.0
    %613 = vmatpush1.msra.mxu0 0.0
    %614 = vmatprep.subr.mxu0 0.0
    %615 = vmatpush1.msra.mxu0 0.0
    %616 = vmatprep.subr.mxu0 0.0
    %617 = vmatpush1.msra.mxu0 0.0
    %618 = vmatprep.subr.mxu0 0.0
    %619 = vmatpush1.msra.mxu0 0.0
    %620 = vmatprep.subr.mxu0 0.0
    %621 = vmatpush1.msra.mxu0 %v27
    %622 = vmatprep.subr.mxu0 0.0
    %623 = vmatpush1.msra.mxu0 %v26
    %624 = vmatprep.subr.mxu0 0.0
    %625 = vmatpush1.msra.mxu0 %v25
    %626 = vmatprep.subr.mxu0 0.0
    %627 = vmatpush1.msra.mxu0 %v24
    %628 = vmatprep.subr.mxu0 0.0
    %629 = vmatpush2.msra.mxu0 0.0
    %630 = vmatprep.subr.mxu0 0.0
    %631 = vmatpush2.msra.mxu0 0.0
    %632 = vmatprep.subr.mxu0 0.0
    %633 = vmatpush2.msra.mxu0 0.0
    %634 = vmatprep.subr.mxu0 0.0
    %635 = vmatpush2.msra.mxu0 0.0
    %636 = vmatprep.subr.mxu0 0.0
    %637 = vmatpush2.msra.mxu0 0.0
    %638 = vmatprep.subr.mxu0 0.0
    %639 = vmatpush2.msra.mxu0 0.0
    %640 = vmatprep.subr.mxu0 0.0
    %641 = vmatpush2.msra.mxu0 0.0
    %642 = vmatprep.subr.mxu0 0.0
    %643 = vmatpush2.msra.mxu0 0.0
    %644 = vmatprep.subr.mxu0 0.0
    %645 = vmatpush2.msra.mxu0 0.0
    %646 = vmatprep.subr.mxu0 0.0
    %647 = vmatpush2.msra.mxu0 0.0
    %648 = vmatprep.subr.mxu0 0.0
    %649 = vmatpush2.msra.mxu0 0.0
    %650 = vmatprep.subr.mxu0 0.0
    %651 = vmatpush2.msra.mxu0 0.0
    %652 = vmatprep.subr.mxu0 0.0
    %653 = vmatpush2.msra.mxu0 0.0
    %654 = vmatprep.subr.mxu0 0.0
    %655 = vmatpush2.msra.mxu0 0.0
    %656 = vmatprep.subr.mxu0 0.0
    %657 = vmatpush2.msra.mxu0 0.0
    %658 = vmatprep.subr.mxu0 0.0
    %659 = vmatpush2.msra.mxu0 0.0
    %660 = vmatprep.mubr.f32.mxu0 0.0
    %661 = vmatmul.mubr.f32.gmra.mxu0 %v591
    %v662 = vpop.f32.mrf.mxu0
    %v663 = vadd.f32 %v589, %v662
    %v664 = vpop.f32.mrf.mxu0
    %665 = vmatprep.mubr.f32.mxu0 0.0
    %666 = vmatmul.mubr.f32.gmra.mxu0 %v594
    %v667 = vpop.f32.mrf.mxu0
    %v668 = vadd.f32 %v589, %v667
    %v669 = vpop.f32.mrf.mxu0
    %670 = vdwg.mxu0
    %v671 = vadd.f32 %v18, %v663
    %v672 = vadd.f32 %v19, %v668
    %v673 = vsel %vm74, %v671, 0.0
    %674 = vadd.xlane.f32.xlu0 %v673
    %v675 = vpop.xlane.xlu0 %674
    %v676 = vsel %vm74, %v672, 0.0
    %677 = vadd.xlane.f32.xlu0 %v676
    %v678 = vpop.xlane.xlu0 %677
    %v679 = vrcp.pop 32.0
    %v680 = vmul.f32 %v675, %v679
    %v681 = vmul.f32 %v678, %v679
    %v682 = vsub.f32 %v671, %v680
    %v683 = vsub.f32 %v672, %v681
    %v684 = vmul.f32 %v682, %v682
    %v685 = vmul.f32 %v683, %v683
    %v686 = vsel %vm74, %v684, 0.0
    %687 = vadd.xlane.f32.xlu0 %v686
    %v688 = vpop.xlane.xlu0 %687
    %v689 = vsel %vm74, %v685, 0.0
    %690 = vadd.xlane.f32.xlu0 %v689
    %v691 = vpop.xlane.xlu0 %690
    %v692 = vmul.f32 %v688, %v679
    %v693 = vmul.f32 %v691, %v679
    %v694 = vadd.f32 %v692, 1e-05
    %v695 = vadd.f32 %v693, 1e-05
    %v696 = vrsqrt.pop %v694
    %v697 = vrsqrt.pop %v695
    %v698 = vmul.f32 %v682, %v696
    %v699 = vmul.f32 %v683, %v697
    %v700 = vlaneseq
    %v701 = vshrl.u32 %v700, 7
    %v702 = vsub.s32 0, %v701
    %v703 = vrot.slane %v44, %v702
    %v704 = vmul.f32 %v698, %v703
    %v705 = vmul.f32 %v699, %v703
    %v706 = vlaneseq
    %v707 = vshrl.u32 %v706, 7
    %v708 = vsub.s32 0, %v707
    %v709 = vrot.slane %v45, %v708
    %v710 = vadd.f32 %v704, %v709
    %v711 = vadd.f32 %v705, %v709
    %v712 = vlaneseq
    %v713 = vshrl.u32 %v712, 7
    %v714 = vsub.s32 0, %v713
    %v715 = vrot.slane %v42, %v714
    %v717 = vsel %vm74, %v710, 0
    %v720 = vsel %vm74, %v711, 0
    %722 = vmatprep.subr.mxu0 0.0
    %723 = vmatpush1.msra.mxu0 0.0
    %724 = vmatprep.subr.mxu0 0.0
    %725 = vmatpush1.msra.mxu0 0.0
    %726 = vmatprep.subr.mxu0 0.0
    %727 = vmatpush1.msra.mxu0 0.0
    %728 = vmatprep.subr.mxu0 0.0
    %729 = vmatpush1.msra.mxu0 0.0
    %730 = vmatprep.subr.mxu0 0.0
    %731 = vmatpush1.msra.mxu0 0.0
    %732 = vmatprep.subr.mxu0 0.0
    %733 = vmatpush1.msra.mxu0 0.0
    %734 = vmatprep.subr.mxu0 0.0
    %735 = vmatpush1.msra.mxu0 0.0
    %736 = vmatprep.subr.mxu0 0.0
    %737 = vmatpush1.msra.mxu0 0.0
    %738 = vmatprep.subr.mxu0 0.0
    %739 = vmatpush1.msra.mxu0 0.0
    %740 = vmatprep.subr.mxu0 0.0
    %741 = vmatpush1.msra.mxu0 0.0
    %742 = vmatprep.subr.mxu0 0.0
    %743 = vmatpush1.msra.mxu0 0.0
    %744 = vmatprep.subr.mxu0 0.0
    %745 = vmatpush1.msra.mxu0 0.0
    %746 = vmatprep.subr.mxu0 0.0
    %747 = vmatpush1.msra.mxu0 %v31
    %748 = vmatprep.subr.mxu0 0.0
    %749 = vmatpush1.msra.mxu0 %v30
    %750 = vmatprep.subr.mxu0 0.0
    %751 = vmatpush1.msra.mxu0 %v29
    %752 = vmatprep.subr.mxu0 0.0
    %753 = vmatpush1.msra.mxu0 %v28
    %754 = vmatprep.subr.mxu0 0.0
    %755 = vmatpush2.msra.mxu0 0.0
    %756 = vmatprep.subr.mxu0 0.0
    %757 = vmatpush2.msra.mxu0 0.0
    %758 = vmatprep.subr.mxu0 0.0
    %759 = vmatpush2.msra.mxu0 0.0
    %760 = vmatprep.subr.mxu0 0.0
    %761 = vmatpush2.msra.mxu0 0.0
    %762 = vmatprep.subr.mxu0 0.0
    %763 = vmatpush2.msra.mxu0 0.0
    %764 = vmatprep.subr.mxu0 0.0
    %765 = vmatpush2.msra.mxu0 0.0
    %766 = vmatprep.subr.mxu0 0.0
    %767 = vmatpush2.msra.mxu0 0.0
    %768 = vmatprep.subr.mxu0 0.0
    %769 = vmatpush2.msra.mxu0 0.0
    %770 = vmatprep.subr.mxu0 0.0
    %771 = vmatpush2.msra.mxu0 0.0
    %772 = vmatprep.subr.mxu0 0.0
    %773 = vmatpush2.msra.mxu0 0.0
    %774 = vmatprep.subr.mxu0 0.0
    %775 = vmatpush2.msra.mxu0 0.0
    %776 = vmatprep.subr.mxu0 0.0
    %777 = vmatpush2.msra.mxu0 0.0
    %778 = vmatprep.subr.mxu0 0.0
    %779 = vmatpush2.msra.mxu0 0.0
    %780 = vmatprep.subr.mxu0 0.0
    %781 = vmatpush2.msra.mxu0 0.0
    %782 = vmatprep.subr.mxu0 0.0
    %783 = vmatpush2.msra.mxu0 0.0
    %784 = vmatprep.subr.mxu0 0.0
    %785 = vmatpush2.msra.mxu0 0.0
    %786 = vmatprep.mubr.f32.mxu0 0.0
    %787 = vmatmul.mubr.f32.gmra.mxu0 %v717
    %v788 = vpop.f32.mrf.mxu0
    %v789 = vadd.f32 %v715, %v788
    %v790 = vpop.f32.mrf.mxu0
    %791 = vmatprep.mubr.f32.mxu0 0.0
    %792 = vmatmul.mubr.f32.gmra.mxu0 %v720
    %v793 = vpop.f32.mrf.mxu0
    %v794 = vadd.f32 %v715, %v793
    %v795 = vpop.f32.mrf.mxu0
    %796 = vdwg.mxu0
    %v797 = vmax.f32 %v789, 0.0
    %v798 = vmax.f32 %v794, 0.0
    %v799 = vlaneseq
    %v800 = vshrl.u32 %v799, 7
    %v801 = vsub.s32 0, %v800
    %v802 = vrot.slane %v43, %v801
    %v804 = vsel %vm333, %v797, 0
    %v807 = vsel %vm333, %v798, 0
    %809 = vmatprep.subr.mxu0 0.0
    %810 = vmatpush1.msra.mxu0 0.0
    %811 = vmatprep.subr.mxu0 0.0
    %812 = vmatpush1.msra.mxu0 0.0
    %813 = vmatprep.subr.mxu0 0.0
    %814 = vmatpush1.msra.mxu0 0.0
    %815 = vmatprep.subr.mxu0 0.0
    %816 = vmatpush1.msra.mxu0 0.0
    %817 = vmatprep.subr.mxu0 0.0
    %818 = vmatpush1.msra.mxu0 0.0
    %819 = vmatprep.subr.mxu0 0.0
    %820 = vmatpush1.msra.mxu0 0.0
    %821 = vmatprep.subr.mxu0 0.0
    %822 = vmatpush1.msra.mxu0 0.0
    %823 = vmatprep.subr.mxu0 0.0
    %824 = vmatpush1.msra.mxu0 0.0
    %825 = vmatprep.subr.mxu0 0.0
    %826 = vmatpush1.msra.mxu0 %v39
    %827 = vmatprep.subr.mxu0 0.0
    %828 = vmatpush1.msra.mxu0 %v38
    %829 = vmatprep.subr.mxu0 0.0
    %830 = vmatpush1.msra.mxu0 %v37
    %831 = vmatprep.subr.mxu0 0.0
    %832 = vmatpush1.msra.mxu0 %v36
    %833 = vmatprep.subr.mxu0 0.0
    %834 = vmatpush1.msra.mxu0 %v35
    %835 = vmatprep.subr.mxu0 0.0
    %836 = vmatpush1.msra.mxu0 %v34
    %837 = vmatprep.subr.mxu0 0.0
    %838 = vmatpush1.msra.mxu0 %v33
    %839 = vmatprep.subr.mxu0 0.0
    %840 = vmatpush1.msra.mxu0 %v32
    %841 = vmatprep.subr.mxu0 0.0
    %842 = vmatpush2.msra.mxu0 0.0
    %843 = vmatprep.subr.mxu0 0.0
    %844 = vmatpush2.msra.mxu0 0.0
    %845 = vmatprep.subr.mxu0 0.0
    %846 = vmatpush2.msra.mxu0 0.0
    %847 = vmatprep.subr.mxu0 0.0
    %848 = vmatpush2.msra.mxu0 0.0
    %849 = vmatprep.subr.mxu0 0.0
    %850 = vmatpush2.msra.mxu0 0.0
    %851 = vmatprep.subr.mxu0 0.0
    %852 = vmatpush2.msra.mxu0 0.0
    %853 = vmatprep.subr.mxu0 0.0
    %854 = vmatpush2.msra.mxu0 0.0
    %855 = vmatprep.subr.mxu0 0.0
    %856 = vmatpush2.msra.mxu0 0.0
    %857 = vmatprep.subr.mxu0 0.0
    %858 = vmatpush2.msra.mxu0 0.0
    %859 = vmatprep.subr.mxu0 0.0
    %860 = vmatpush2.msra.mxu0 0.0
    %861 = vmatprep.subr.mxu0 0.0
    %862 = vmatpush2.msra.mxu0 0.0
    %863 = vmatprep.subr.mxu0 0.0
    %864 = vmatpush2.msra.mxu0 0.0
    %865 = vmatprep.subr.mxu0 0.0
    %866 = vmatpush2.msra.mxu0 0.0
    %867 = vmatprep.subr.mxu0 0.0
    %868 = vmatpush2.msra.mxu0 0.0
    %869 = vmatprep.subr.mxu0 0.0
    %870 = vmatpush2.msra.mxu0 0.0
    %871 = vmatprep.subr.mxu0 0.0
    %872 = vmatpush2.msra.mxu0 0.0
    %873 = vmatprep.mubr.f32.mxu0 0.0
    %874 = vmatmul.mubr.f32.gmra.mxu0 %v804
    %v875 = vpop.f32.mrf.mxu0
    %v876 = vadd.f32 %v802, %v875
    %v877 = vpop.f32.mrf.mxu0
    %878 = vmatprep.mubr.f32.mxu0 0.0
    %879 = vmatmul.mubr.f32.gmra.mxu0 %v807
    %v880 = vpop.f32.mrf.mxu0
    %v881 = vadd.f32 %v802, %v880
    %v882 = vpop.f32.mrf.mxu0
    %883 = vdwg.mxu0
    %v884 = vadd.f32 %v710, %v876
    %v885 = vadd.f32 %v711, %v881
    %v886 = vsel %vm74, %v884, 0.0
    %887 = vadd.xlane.f32.xlu0 %v886
    %v888 = vpop.xlane.xlu0 %887
    %v889 = vsel %vm74, %v885, 0.0
    %890 = vadd.xlane.f32.xlu0 %v889
    %v891 = vpop.xlane.xlu0 %890
    %v892 = vmul.f32 %v888, %v679
    %v893 = vmul.f32 %v891, %v679
    %v894 = vsub.f32 %v884, %v892
    %v895 = vsub.f32 %v885, %v893
    %v896 = vmul.f32 %v894, %v894
    %v897 = vmul.f32 %v895, %v895
    %v898 = vsel %vm74, %v896, 0.0
    %899 = vadd.xlane.f32.xlu0 %v898
    %v900 = vpop.xlane.xlu0 %899
    %v901 = vsel %vm74, %v897, 0.0
    %902 = vadd.xlane.f32.xlu0 %v901
    %v903 = vpop.xlane.xlu0 %902
    %v904 = vmul.f32 %v900, %v679
    %v905 = vmul.f32 %v903, %v679
    %v906 = vadd.f32 %v904, 1e-05
    %v907 = vadd.f32 %v905, 1e-05
    %v908 = vrsqrt.pop %v906
    %v909 = vrsqrt.pop %v907
    %v910 = vmul.f32 %v894, %v908
    %v911 = vmul.f32 %v895, %v909
    %v912 = vlaneseq
    %v913 = vshrl.u32 %v912, 7
    %v914 = vsub.s32 0, %v913
    %v915 = vrot.slane %v46, %v914
    %v916 = vmul.f32 %v910, %v915
    %v917 = vmul.f32 %v911, %v915
    %v918 = vlaneseq
    %v919 = vshrl.u32 %v918, 7
    %v920 = vsub.s32 0, %v919
    %v921 = vrot.slane %v47, %v920
    %v922 = vadd.f32 %v916, %v921
    %v923 = vadd.f32 %v917, %v921
    %924 = vst.msk [vmem:[#allocation2] sm:$0xff] %vm74, %v922
    %925 = vst.msk [vmem:[#allocation2 + $0x8] sm:$0xff] %vm74, %v923
    // Predicated region
    $region18: #{tpu_custom_call.1} parent=1 // pred_check
      _
    $region19: #{tpu_custom_call.1} parent=1 // pred_check_branch
      %927 = sbr.rel (0) target = $region21
    $region20: #{tpu_custom_call.1} parent=1 // pred_region
      %s929 = ssub.s32 256, 256
      %930 = vsyncadd [#allocation3], %s929
      %s931 = sshll.u32 [#allocation2], 4
      %s932 = int_to_ptr.vmem [resolvable:$true] %s931
      %937 = dma.vmem_to_hbm [thread:$0]  %s932, 256, %s4, [#allocation3], 128, 128, 8
    $region21: #{tpu_custom_call.1} parent=1 // pred_fallthru
      _
    // Predicated region
    $region22: #{tpu_custom_call.1} parent=1 // pred_check
      _
    $region23: #{tpu_custom_call.1} parent=1 // pred_check_branch
      %939 = sbr.rel (0) target = $region25
    $region24: #{tpu_custom_call.1} parent=1 // pred_region
      %940 = dma.done [#allocation3], 256
    $region25: #{tpu_custom_call.1} parent=1 // pred_fallthru
      _
    %941 = vsyncpa [#allocation3], 1

</llo_original>
